<compile_context>
chip_gen: v7x
topology: tpu7x:2x2x1
jax: 0.10.0
libtpu: 0.0.40
codegen_flags: <defaults>
</compile_context>

<pallas_src>
import math
import numpy as np
import jax
import jax.numpy as jnp
from jax.experimental import pallas as pl
from jax.experimental.pallas import tpu as pltpu


A_PAD = 128  # lane-dense candidate-action axis (q row width, gsel rows)


def _round_up(x, m):
    return (x + m - 1) // m * m


# ----------------------------------------------------------------------------
# Pallas kernel: fused DQN forward, one grid step per state
# ----------------------------------------------------------------------------
def dqn_forward_kernel(padj_ref, psel_ref, xaug_ref, wgcn_ref, whead_ref, q_ref):
    E = wgcn_ref.shape[1]

    padj = padj_ref[0]          # (N, N+2) = [adj_norm^2 | adj_norm@1 | 1]
    sel = psel_ref[0]           # (R, N): rows 0..A_PAD-1 signed action select,
                                #          row A_PAD = wpool, row A_PAD+1 = onehot(target)

    # Fused two-layer (bias-linear) GCN:
    #   mu = adj^2 @ (X @ W0W1) + rowsum(adj) * (b0 @ W1) + b1
    # computed as two matmuls over bias-augmented operands.
    xw = jnp.dot(xaug_ref[...], wgcn_ref[...],
                 preferred_element_type=jnp.float32)                  # (N+2, E)
    mu = jnp.dot(padj, xw, preferred_element_type=jnp.float32)        # (N,  E)

    # One fused selection matmul replaces pool / target-gather / action-gather.
    selmu = jnp.dot(sel, mu, preferred_element_type=jnp.float32)      # (R, E)
    mu_a = selmu[0:A_PAD]                 # (A_PAD, E) signed candidate embeds
    pooled = selmu[A_PAD:A_PAD + 1]       # (1, E) multiplicity-weighted b-hop mean
    mu_t = selmu[A_PAD + 1:A_PAD + 2]     # (1, E) target-node embed

    whead = whead_ref[...]                # (3E+3, H) = [Wfc1 ; bfc1 ; wfc2^T ; bfc2 pad]
    w_p = whead[0:E]
    w_t = whead[E:2 * E]
    w_a = whead[2 * E:3 * E]
    bfc1 = whead[3 * E:3 * E + 1]
    wfc2t = whead[3 * E + 1:3 * E + 2]
    bfc2 = whead[3 * E + 2:3 * E + 3, 0:1]

    # fc1 as a split matmul over [pooled | mu_t | mu_a]; the state part is one
    # row broadcast onto every action row (VPU add).
    c = (jnp.dot(pooled, w_p, preferred_element_type=jnp.float32)
         + jnp.dot(mu_t, w_t, preferred_element_type=jnp.float32)
         + bfc1)                                                      # (1, H)
    h = jnp.maximum(
        jnp.dot(mu_a, w_a, preferred_element_type=jnp.float32) + c, 0.0)  # (A_PAD, H)

    # fc2 emitted lane-dense: q row (1, A_PAD) = wfc2^T contracted with h on H.
    q = jax.lax.dot_general(wfc2t, h, (((1,), (1,)), ((), ())),
                            preferred_element_type=jnp.float32) + bfc2    # (1, A_PAD)
    q_ref[0] = q


def dqn_forward_pallas(wgcn, whead, xaug, padj, psel):
    S, N, Np2 = padj.shape
    R = psel.shape[1]
    return pl.pallas_call(
        dqn_forward_kernel,
        out_shape=jax.ShapeDtypeStruct((S, 1, A_PAD), jnp.float32),
        grid=(S,),
        in_specs=[
            pl.BlockSpec((1, N, Np2), lambda s: (s, 0, 0)),          # per-state adj pack
            pl.BlockSpec((1, R, N), lambda s: (s, 0, 0)),            # per-state selection
            pl.BlockSpec(xaug.shape, lambda s: (0, 0)),              # resident
            pl.BlockSpec(wgcn.shape, lambda s: (0, 0)),              # resident
            pl.BlockSpec(whead.shape, lambda s: (0, 0)),             # resident
        ],
        out_specs=pl.BlockSpec((1, 1, A_PAD), lambda s: (s, 0, 0)),
        compiler_params=pltpu.CompilerParams(
            dimension_semantics=("parallel",)),
    )(padj, psel, xaug, wgcn, whead)


# ----------------------------------------------------------------------------
# Plain-JAX reference (mirrors the PyTorch math, UNFUSED) — validation only
# ----------------------------------------------------------------------------
def dqn_forward_ref(params, adj_norm, x, wpool, onehot, gsel):
    mu = adj_norm @ (x @ params["w0"]) + params["b0"]
    mu = adj_norm @ (mu @ params["w1"]) + params["b1"]
    pooled = wpool @ mu
    mu_t = onehot @ mu
    mu_a = gsel @ mu
    A = gsel.shape[0]
    embed = jnp.concatenate(
        [jnp.tile(pooled, (A, 1)), jnp.tile(mu_t, (A, 1)), mu_a], axis=1)
    h = jnp.maximum(embed @ params["wfc1"] + params["bfc1"], 0.0)
    return h @ params["wfc2"] + params["bfc2"]


# ----------------------------------------------------------------------------
# Host glue: graph preprocessing (adjacency fold, hop weights, action select)
# ----------------------------------------------------------------------------
def build_state_aux(edge_index_np, target, num_nodes, num_hops):
    src, dst = edge_index_np
    A = np.zeros((num_nodes, num_nodes), np.float32)
    np.add.at(A, (src, dst), 1.0)

    # GCNConv normalization: D^-1/2 (A + I) D^-1/2
    A_hat = A + np.eye(num_nodes, dtype=np.float32)
    dinv = (1.0 / np.sqrt(A_hat.sum(axis=1))).astype(np.float32)
    adj_norm = (A_hat * dinv[:, None] * dinv[None, :]).astype(np.float32)

    # GCN-fold pack: [adj^2 | adj@1 | 1]  (bias terms handled by augmentation)
    adj2 = (adj_norm @ adj_norm).astype(np.float32)
    rowsum = adj_norm.sum(axis=1, keepdims=True).astype(np.float32)
    padj = np.concatenate(
        [adj2, rowsum, np.ones((num_nodes, 1), np.float32)], axis=1)  # (N, N+2)

    # bhop_nbrs multiplicity weights: hops expand through out- AND in-edges
    # (M = A + A^T), duplicates counted, summed over hops -> weighted mean.
    M = A + A.T
    c = np.zeros((num_nodes,), np.float32)
    c[target] = 1.0
    w = np.zeros((num_nodes,), np.float32)
    for _ in range(num_hops):
        c = M @ c
        w = w + c
    s = float(w.sum())
    wpool = (w / max(s, 1.0) if s > 0 else np.zeros_like(w))[None, :]   # mean (NaN->0)

    onehot = np.zeros((1, num_nodes), np.float32)
    onehot[0, target] = 1.0

    # get_all_actions with empty sol_set: every node except the target;
    # mu_a[i] = sign(a_i) * mu[|a_i|] expressed as a signed selection matrix.
    acts = np.array([n for n in range(num_nodes) if n != target], np.int32)
    gsel = np.zeros((A_PAD, num_nodes), np.float32)
    gsel[np.arange(acts.shape[0]), np.abs(acts)] = np.sign(acts).astype(np.float32)

    r_pad = _round_up(A_PAD + 2, 8)
    sel_state = np.zeros((r_pad, num_nodes), np.float32)   # state rows only
    sel_state[A_PAD] = wpool[0]
    sel_state[A_PAD + 1] = onehot[0]
    sel_full = sel_state.copy()
    sel_full[0:A_PAD] = gsel

    return dict(
        adj_norm=jnp.asarray(adj_norm),
        wpool=jnp.asarray(wpool),
        onehot=jnp.asarray(onehot),
        gsel=jnp.asarray(gsel[:acts.shape[0]]),
        padj=jnp.asarray(padj),
        sel=jnp.asarray(sel_full),
        sel_state_np=sel_state,
        acts=jnp.asarray(acts),
    )


def build_xaug(node_features):
    """[ X | 0 | 0 ; e_F ; e_{F+1} ] so xaug @ wgcn = [X@W0W1 ; b0@W1 ; b1]."""
    N, F = node_features.shape
    xaug = np.zeros((N + 2, F + 2), np.float32)
    xaug[:N, :F] = np.asarray(node_features, np.float32)
    xaug[N, F] = 1.0
    xaug[N + 1, F + 1] = 1.0
    return jnp.asarray(xaug)


def fold_params(params):
    """Fold the two linear GCN layers and pack the head into one array."""
    w01 = params["w0"] @ params["w1"]              # (F, E)
    b01 = params["b0"] @ params["w1"]              # (1, E)
    wgcn = jnp.concatenate([w01, b01, params["b1"]], axis=0)          # (F+2, E)
    H = params["wfc1"].shape[1]
    bfc2_row = jnp.zeros((1, H), jnp.float32).at[0, 0].set(params["bfc2"][0, 0])
    whead = jnp.concatenate(
        [params["wfc1"], params["bfc1"], params["wfc2"].T, bfc2_row], axis=0)  # (3E+3, H)
    return dict(wgcn=wgcn, whead=whead)


# ----------------------------------------------------------------------------
# Parameter construction (deterministic, PyTorch-Linear-style uniform init)
# ----------------------------------------------------------------------------
def make_dqn_params(key, feat_dim, embed_dim, hidden):
    ks = jax.random.split(key, 8)

    def u(k, shape, fan_in):
        b = 1.0 / math.sqrt(fan_in)
        return jax.random.uniform(k, shape, jnp.float32, -b, b)

    in_size = 3 * embed_dim
    return dict(
        w0=u(ks[0], (feat_dim, embed_dim), feat_dim),
        b0=u(ks[1], (1, embed_dim), feat_dim),
        w1=u(ks[2], (embed_dim, embed_dim), embed_dim),
        b1=u(ks[3], (1, embed_dim), embed_dim),
        wfc1=u(ks[4], (in_size, hidden), in_size),
        bfc1=u(ks[5], (1, hidden), in_size),
        wfc2=u(ks[6], (hidden, 1), hidden),
        bfc2=u(ks[7], (1, 1), hidden),
    )


class TStepDQNPallas:
    """num_steps independent DQNs; forward(time_t, ...) dispatches to one."""

    def __init__(self, num_steps, edge_index, node_features,
                 num_hops=2, hidden=32, embed_dim=16, seed=0):
        self.num_steps = num_steps
        self.edge_index_np = (np.asarray(edge_index[0]), np.asarray(edge_index[1]))
        self.node_features = node_features
        self.num_hops = num_hops
        self.embed_dim = embed_dim
        feat_dim = node_features.shape[1]
        base = jax.random.PRNGKey(seed)
        self.params = [make_dqn_params(jax.random.fold_in(base, i),
                                       feat_dim, embed_dim, hidden)
                       for i in range(num_steps)]
        self.folded = [fold_params(p) for p in self.params]
        self.xaug = build_xaug(node_features)
        self._aux_cache = {}

    def _get_aux(self, target):
        target = int(target)
        if target not in self._aux_cache:
            self._aux_cache[target] = build_state_aux(
                self.edge_index_np, target,
                self.node_features.shape[0], self.num_hops)
        return self._aux_cache[target]

    def forward(self, time_t, states, actions=None, greedy_acts=False):
        assert 0 <= time_t < self.num_steps
        folded = self.folded[time_t]

        padj_list, sel_list, acts_list = [], [], []
        for i, (target, _graph) in enumerate(states):
            aux = self._get_aux(target)
            padj_list.append(aux["padj"])
            if actions is not None:
                # single given action: same kernel shapes (one nonzero gsel row)
                a = int(actions[i])
                g = aux["sel_state_np"].copy()
                g[0, abs(a)] = np.sign(a)               # sign(0)==0, as in torch
                sel_list.append(jnp.asarray(g))
                acts_list.append(jnp.asarray([a], jnp.int32))
            else:
                sel_list.append(aux["sel"])
                acts_list.append(aux["acts"])

        padj = jnp.stack(padj_list)                      # (S, N, N+2)
        psel = jnp.stack(sel_list)                       # (S, R, N)
        q_pad = dqn_forward_pallas(folded["wgcn"], folded["whead"],
                                   self.xaug, padj, psel)  # (S, 1, A_PAD)

        list_q = [q_pad[i, 0, :acts_list[i].shape[0]][:, None]
                  for i in range(len(states))]

        if greedy_acts:
            greedy_a, greedy_v = [], []
            for q, acts in zip(list_q, acts_list):
                idx = jnp.argmax(q[:, 0])
                greedy_a.append(acts[idx])
                greedy_v.append(q[idx, 0])
            return jnp.stack(greedy_a), list_q
        return actions, list_q


# ----------------------------------------------------------------------------
# Main
# ----------------------------------------------------------------------------
if __name__ == "__main__":
    N, F, E, H = 32, 16, 16, 32        # nodes, feat dim, embed_dim, dqn_hidden
    NUM_STEPS, NUM_HOPS = 2, 2

    # deterministic undirected synthetic graph (ring + chords), both directions
    src, dst = [], []
    for i in range(N):
        for j in (((i + 1) % N), ((i + 5) % N)):
            src += [i, j]
            dst += [j, i]
    edge_index = (jnp.asarray(src, jnp.int32), jnp.asarray(dst, jnp.int32))

    key = jax.random.PRNGKey(0)
    node_features = jax.random.normal(key, (N, F), dtype=jnp.float32)

    model = TStepDQNPallas(NUM_STEPS, edge_index, node_features,
                           num_hops=NUM_HOPS, hidden=H, embed_dim=E, seed=0)

    states = [(3, edge_index), (17, edge_index)]       # batch of 2 states

    # --- all-candidate-actions path (one batched pallas_call) ---
    _, list_q = model.forward(time_t=1, states=states, actions=None)
    for q in list_q:
        jax.block_until_ready(q)

    params = model.params[1]
    for (target, _), q in zip(states, list_q):
        aux = model._get_aux(target)
        q_ref = dqn_forward_ref(params, aux["adj_norm"], node_features,
                                aux["wpool"], aux["onehot"], aux["gsel"])
        assert q.shape == (N - 1, 1)
        np.testing.assert_allclose(np.asarray(q), np.asarray(q_ref),
                                   rtol=2e-4, atol=2e-4)

    # --- single-given-action path (same kernel shapes, no recompile) ---
    acts_given = [5, 7]
    _, list_q1 = model.forward(time_t=0, states=states, actions=acts_given)
    for q in list_q1:
        jax.block_until_ready(q)
    params0 = model.params[0]
    for (target, _), a, q in zip(states, acts_given, list_q1):
        aux = model._get_aux(target)
        g = np.zeros((1, N), np.float32)
        g[0, abs(a)] = np.sign(a)
        q_ref = dqn_forward_ref(params0, aux["adj_norm"], node_features,
                                aux["wpool"], aux["onehot"], jnp.asarray(g))
        assert q.shape == (1, 1)
        np.testing.assert_allclose(np.asarray(q), np.asarray(q_ref),
                                   rtol=2e-4, atol=2e-4)

    print("KERNEL_OK")
</pallas_src>

<mosaic_0001>
module attributes {stable_mosaic.version = 11 : i64} {
  func.func @dqn_forward_kernel(%arg0: i32, %arg1: memref<1x32x34xf32, #tpu.memory_space<vmem>>, %arg2: memref<1x136x32xf32, #tpu.memory_space<vmem>>, %arg3: memref<34x18xf32, #tpu.memory_space<vmem>>, %arg4: memref<18x16xf32, #tpu.memory_space<vmem>>, %arg5: memref<51x32xf32, #tpu.memory_space<vmem>>, %arg6: memref<1x1x128xf32, #tpu.memory_space<vmem>>) attributes {dimension_semantics = [#tpu.dimension_semantics<parallel>], iteration_bounds = array<i64: 2>, scalar_prefetch = 0 : i64, scratch_operands = 0 : i64, tpu.core_type = #tpu.core_type<tc>, window_params = [{transform_indices = @transform_0, window_bounds = array<i64: 1, 32, 34>}, {transform_indices = @transform_1, window_bounds = array<i64: 1, 136, 32>}, {pipeline_mode = #tpu.pipeline_mode<synchronous>, transform_indices = @transform_2, window_bounds = array<i64: 34, 18>}, {pipeline_mode = #tpu.pipeline_mode<synchronous>, transform_indices = @transform_3, window_bounds = array<i64: 18, 16>}, {pipeline_mode = #tpu.pipeline_mode<synchronous>, transform_indices = @transform_4, window_bounds = array<i64: 51, 32>}, {transform_indices = @transform_5, window_bounds = array<i64: 1, 1, 128>}]} {
    %c0 = arith.constant 0 : index
    %c0_0 = arith.constant 0 : index
    %c0_1 = arith.constant 0 : index
    %0 = vector.load %arg1[%c0, %c0_0, %c0_1] : memref<1x32x34xf32, #tpu.memory_space<vmem>>, vector<1x32x34xf32>
    %1 = vector.shape_cast %0 : vector<1x32x34xf32> to vector<32x34xf32>
    %c0_2 = arith.constant 0 : index
    %c0_3 = arith.constant 0 : index
    %c0_4 = arith.constant 0 : index
    %2 = vector.load %arg2[%c0_2, %c0_3, %c0_4] : memref<1x136x32xf32, #tpu.memory_space<vmem>>, vector<1x136x32xf32>
    %3 = vector.shape_cast %2 : vector<1x136x32xf32> to vector<136x32xf32>
    %c0_5 = arith.constant 0 : index
    %c0_6 = arith.constant 0 : index
    %4 = vector.load %arg3[%c0_5, %c0_6] : memref<34x18xf32, #tpu.memory_space<vmem>>, vector<34x18xf32>
    %c0_7 = arith.constant 0 : index
    %c0_8 = arith.constant 0 : index
    %5 = vector.load %arg4[%c0_7, %c0_8] : memref<18x16xf32, #tpu.memory_space<vmem>>, vector<18x16xf32>
    %cst = arith.constant dense<0.000000e+00> : vector<34x16xf32>
    %6 = tpu.matmul %4, %5, %cst {dimension_numbers = #tpu.dot_dimension_numbers<[1], [0], [0], [1], [0, 0, 1, 1], [], []>} : vector<34x18xf32>, vector<18x16xf32>, vector<34x16xf32> -> vector<34x16xf32>
    %cst_9 = arith.constant dense<0.000000e+00> : vector<32x16xf32>
    %7 = tpu.matmul %1, %6, %cst_9 {dimension_numbers = #tpu.dot_dimension_numbers<[1], [0], [0], [1], [0, 0, 1, 1], [], []>} : vector<32x34xf32>, vector<34x16xf32>, vector<32x16xf32> -> vector<32x16xf32>
    %cst_10 = arith.constant dense<0.000000e+00> : vector<136x16xf32>
    %8 = tpu.matmul %3, %7, %cst_10 {dimension_numbers = #tpu.dot_dimension_numbers<[1], [0], [0], [1], [0, 0, 1, 1], [], []>} : vector<136x32xf32>, vector<32x16xf32>, vector<136x16xf32> -> vector<136x16xf32>
    %9 = vector.extract_strided_slice %8 {offsets = [0, 0], sizes = [128, 16], strides = [1, 1]} : vector<136x16xf32> to vector<128x16xf32>
    %10 = vector.extract_strided_slice %8 {offsets = [128, 0], sizes = [1, 16], strides = [1, 1]} : vector<136x16xf32> to vector<1x16xf32>
    %11 = vector.extract_strided_slice %8 {offsets = [129, 0], sizes = [1, 16], strides = [1, 1]} : vector<136x16xf32> to vector<1x16xf32>
    %c0_11 = arith.constant 0 : index
    %c0_12 = arith.constant 0 : index
    %12 = vector.load %arg5[%c0_11, %c0_12] : memref<51x32xf32, #tpu.memory_space<vmem>>, vector<51x32xf32>
    %13 = vector.extract_strided_slice %12 {offsets = [0, 0], sizes = [16, 32], strides = [1, 1]} : vector<51x32xf32> to vector<16x32xf32>
    %14 = vector.extract_strided_slice %12 {offsets = [16, 0], sizes = [16, 32], strides = [1, 1]} : vector<51x32xf32> to vector<16x32xf32>
    %15 = vector.extract_strided_slice %12 {offsets = [32, 0], sizes = [16, 32], strides = [1, 1]} : vector<51x32xf32> to vector<16x32xf32>
    %16 = vector.extract_strided_slice %12 {offsets = [48, 0], sizes = [1, 32], strides = [1, 1]} : vector<51x32xf32> to vector<1x32xf32>
    %17 = vector.extract_strided_slice %12 {offsets = [49, 0], sizes = [1, 32], strides = [1, 1]} : vector<51x32xf32> to vector<1x32xf32>
    %18 = vector.extract_strided_slice %12 {offsets = [50, 0], sizes = [1, 1], strides = [1, 1]} : vector<51x32xf32> to vector<1x1xf32>
    %cst_13 = arith.constant dense<0.000000e+00> : vector<1x32xf32>
    %19 = tpu.matmul %10, %13, %cst_13 {dimension_numbers = #tpu.dot_dimension_numbers<[1], [0], [0], [1], [0, 0, 1, 1], [], []>} : vector<1x16xf32>, vector<16x32xf32>, vector<1x32xf32> -> vector<1x32xf32>
    %cst_14 = arith.constant dense<0.000000e+00> : vector<1x32xf32>
    %20 = tpu.matmul %11, %14, %cst_14 {dimension_numbers = #tpu.dot_dimension_numbers<[1], [0], [0], [1], [0, 0, 1, 1], [], []>} : vector<1x16xf32>, vector<16x32xf32>, vector<1x32xf32> -> vector<1x32xf32>
    %21 = arith.addf %19, %20 : vector<1x32xf32>
    %22 = arith.addf %21, %16 : vector<1x32xf32>
    %cst_15 = arith.constant dense<0.000000e+00> : vector<128x32xf32>
    %23 = tpu.matmul %9, %15, %cst_15 {dimension_numbers = #tpu.dot_dimension_numbers<[1], [0], [0], [1], [0, 0, 1, 1], [], []>} : vector<128x16xf32>, vector<16x32xf32>, vector<128x32xf32> -> vector<128x32xf32>
    %24 = vector.broadcast %22 : vector<1x32xf32> to vector<128x32xf32>
    %25 = arith.addf %23, %24 : vector<128x32xf32>
    %cst_16 = arith.constant 0.000000e+00 : f32
    %26 = vector.broadcast %cst_16 : f32 to vector<128x32xf32>
    %27 = arith.maximumf %25, %26 : vector<128x32xf32>
    %cst_17 = arith.constant dense<0.000000e+00> : vector<1x128xf32>
    %28 = tpu.matmul %17, %27, %cst_17 {dimension_numbers = #tpu.dot_dimension_numbers<[1], [1], [0], [0], [0, 0, 1, 0], [], []>} : vector<1x32xf32>, vector<128x32xf32>, vector<1x128xf32> -> vector<1x128xf32>
    %29 = vector.broadcast %18 : vector<1x1xf32> to vector<1x128xf32>
    %30 = arith.addf %28, %29 : vector<1x128xf32>
    %c0_18 = arith.constant 0 : index
    %c0_19 = arith.constant 0 : index
    %c0_20 = arith.constant 0 : index
    %31 = vector.load %arg6[%c0_18, %c0_19, %c0_20] : memref<1x1x128xf32, #tpu.memory_space<vmem>>, vector<1x1x128xf32>
    %32 = vector.shape_cast %31 : vector<1x1x128xf32> to vector<1x128xf32>
    %33 = vector.shape_cast %30 : vector<1x128xf32> to vector<1x1x128xf32>
    tpu.vector_store %arg6[%c0_18, %c0_19, %c0_20], %33 {strides = array<i32>} : memref<1x1x128xf32, #tpu.memory_space<vmem>>, vector<1x1x128xf32>,
    return
  }
  func.func @transform_0(%arg0: i32) -> (i32, i32, i32) {
    %c0_i32 = arith.constant 0 : i32
    %c0_i32_0 = arith.constant 0 : i32
    %c0_i32_1 = arith.constant 0 : i32
    return %arg0, %c0_i32, %c0_i32_0 : i32, i32, i32
  }
  func.func @transform_1(%arg0: i32) -> (i32, i32, i32) {
    %c0_i32 = arith.constant 0 : i32
    %c0_i32_0 = arith.constant 0 : i32
    %c0_i32_1 = arith.constant 0 : i32
    return %arg0, %c0_i32, %c0_i32_0 : i32, i32, i32
  }
  func.func @transform_2(%arg0: i32) -> (i32, i32) {
    %c0_i32 = arith.constant 0 : i32
    %c0_i32_0 = arith.constant 0 : i32
    %c0_i32_1 = arith.constant 0 : i32
    return %c0_i32, %c0_i32_0 : i32, i32
  }
  func.func @transform_3(%arg0: i32) -> (i32, i32) {
    %c0_i32 = arith.constant 0 : i32
    %c0_i32_0 = arith.constant 0 : i32
    %c0_i32_1 = arith.constant 0 : i32
    return %c0_i32, %c0_i32_0 : i32, i32
  }
  func.func @transform_4(%arg0: i32) -> (i32, i32) {
    %c0_i32 = arith.constant 0 : i32
    %c0_i32_0 = arith.constant 0 : i32
    %c0_i32_1 = arith.constant 0 : i32
    return %c0_i32, %c0_i32_0 : i32, i32
  }
  func.func @transform_5(%arg0: i32) -> (i32, i32, i32) {
    %c0_i32 = arith.constant 0 : i32
    %c0_i32_0 = arith.constant 0 : i32
    %c0_i32_1 = arith.constant 0 : i32
    return %arg0, %c0_i32, %c0_i32_0 : i32, i32, i32
  }
}

</mosaic_0001>

<llo_original>
// kernel: tpu_custom_call.1
$region0: #{tpu_custom_call.1}
  #allocation0 [shape = 'u32[]', space=smem, size = 0x4, offset = 0x4, fixed_abs, tag = 'smem constant byte address 0x4 - core index']
  #allocation1 [shape = 'u32[144,128]{1,0:T(1,128)}', space=vmem, size = 0x12000, scoped, tag = 'internal scratch']
  %s0 = inlined_call_operand.vmem [shape: f32[2,32,34], index: 0, kind: input, shape index: {}]
  %s1 = inlined_call_operand.vmem [shape: f32[2,136,32], index: 1, kind: input, shape index: {}]
  %s2 = inlined_call_operand.vmem [shape: f32[34,18], index: 2, kind: input, shape index: {}]
  %s3 = inlined_call_operand.vmem [shape: f32[18,16], index: 3, kind: input, shape index: {}]
  %s4 = inlined_call_operand.vmem [shape: f32[51,32], index: 4, kind: input, shape index: {}]
  %s5 = inlined_call_operand.hbm [shape: f32[2,1,128], index: 5, kind: output, shape index: {}]
  %s6 = sld [smem:[#allocation0]]
  $region53: #{tpu_custom_call.1} parent=0
    _
  %s8 = ssub.s32 1, %s6
  %s9 = scalar_select 0, %s8, %s6
  $region1: #{tpu_custom_call.1} parent=0
    #allocation2 [shape = 'u8[1024]{0}', space=vmem, size = 0x400, scoped, tag = 'output window, operand 0']
    #allocation3 [shape = 's32[2]{0}', space=sflag, size = 0x8, scoped, tag = 'scoped memory for tpu_custom_call.1']
    %10 = vsyncpa [#allocation3], 0
    %s11 = scalar_lea.sflag [#allocation3], 1
    %12 = vsyncpa %s11, 0
    loop: start=0, step=1, limit=4
    $region2: #{tpu_custom_call.1} parent=1 // loop_pre_header
      _
    $region3: #{tpu_custom_call.1} parent=1 // loop_header
      %s14 = sphi 0, %s18
      %p15 = scmp.ge.s32.totalorder %s14, 4
      %s24 = sphi 0, %s26
      %s27 = sphi 0, %s24
      %s28 = sphi 0, %s27
      %s44 = sphi 0, %s28
      %s50 = sphi 0, %s52
      %s53 = sphi 0, %s50
      %s54 = sphi 0, %s53
      %s70 = sphi 0, %s54
      %s74 = sphi 0, %s74
      %s76 = sphi 0, %s74
      %s77 = sphi 0, %s76
      %s91 = sphi 0, %s77
      %s95 = sphi 0, %s95
      %s97 = sphi 0, %s95
      %s98 = sphi 0, %s97
      %s112 = sphi 0, %s98
      %s116 = sphi 0, %s116
      %s118 = sphi 0, %s116
      %s119 = sphi 0, %s118
      %s133 = sphi 0, %s119
      %s139 = sphi 0, %s141
      %s142 = sphi 0, %s139
      %s143 = sphi 0, %s142
      %s159 = sphi 0, %s143
    $region4: #{tpu_custom_call.1} parent=1 // loop_header_branch
      %17 = sbr.rel (%p15) target = $region8
    $region5: #{tpu_custom_call.1} parent=1 // loop_body
      %s19 = ssub.s32 %s14, 1
      %s20 = ssub.s32 %s14, 2
      %s21 = sadd.s32 %s14, 1
      %s22 = ssub.s32 %s14, %s21
      %p23 = scmp.eq.s32.totalorder %s22, 0
      %s25 = sadd.s32 %s24, 1
      %s26 = scalar_select %p23, %s24, %s25
      %p29 = pneg %p23
      %p30 = scmp.eq.s32.totalorder %s14, 1
      %p31 = por %p29, %p30
      %p32 = scmp.ne.s32.totalorder %s24, %s27
      %p33 = scmp.eq.s32.totalorder %s14, 0
      %p34 = por %p32, %p33
      %p35 = scmp.ne.s32.totalorder %s24, %s27
      %p36 = scmp.eq.s32.totalorder %s19, 1
      %p37 = por %p35, %p36
      %p38 = scmp.ne.s32.totalorder %s27, %s28
      %p39 = scmp.eq.s32.totalorder %s19, 0
      %p40 = por %p38, %p39
      %p41 = scmp.ne.s32.totalorder %s27, %s28
      %p42 = scmp.eq.s32.totalorder %s20, 1
      %p43 = por %p41, %p42
      %p45 = scmp.ne.s32.totalorder %s28, %s44
      %p46 = scmp.eq.s32.totalorder %s20, 0
      %p47 = por %p45, %p46
      %s48 = ssub.s32 %s14, %s21
      %p49 = scmp.eq.s32.totalorder %s48, 0
      %s51 = sadd.s32 %s50, 1
      %s52 = scalar_select %p49, %s50, %s51
      %p55 = pneg %p49
      %p56 = scmp.eq.s32.totalorder %s14, 1
      %p57 = por %p55, %p56
      %p58 = scmp.ne.s32.totalorder %s50, %s53
      %p59 = scmp.eq.s32.totalorder %s14, 0
      %p60 = por %p58, %p59
      %p61 = scmp.ne.s32.totalorder %s50, %s53
      %p62 = scmp.eq.s32.totalorder %s19, 1
      %p63 = por %p61, %p62
      %p64 = scmp.ne.s32.totalorder %s53, %s54
      %p65 = scmp.eq.s32.totalorder %s19, 0
      %p66 = por %p64, %p65
      %p67 = scmp.ne.s32.totalorder %s53, %s54
      %p68 = scmp.eq.s32.totalorder %s20, 1
      %p69 = por %p67, %p68
      %p71 = scmp.ne.s32.totalorder %s54, %s70
      %p72 = scmp.eq.s32.totalorder %s20, 0
      %p73 = por %p71, %p72
      %s75 = sadd.s32 %s74, 1
      %p78 = scmp.eq.s32.totalorder %s14, 1
      %p79 = scmp.ne.s32.totalorder %s74, %s76
      %p80 = scmp.eq.s32.totalorder %s14, 0
      %p81 = por %p79, %p80
      %p82 = scmp.ne.s32.totalorder %s74, %s76
      %p83 = scmp.eq.s32.totalorder %s19, 1
      %p84 = por %p82, %p83
      %p85 = scmp.ne.s32.totalorder %s76, %s77
      %p86 = scmp.eq.s32.totalorder %s19, 0
      %p87 = por %p85, %p86
      %p88 = scmp.ne.s32.totalorder %s76, %s77
      %p89 = scmp.eq.s32.totalorder %s20, 1
      %p90 = por %p88, %p89
      %p92 = scmp.ne.s32.totalorder %s77, %s91
      %p93 = scmp.eq.s32.totalorder %s20, 0
      %p94 = por %p92, %p93
      %s96 = sadd.s32 %s95, 1
      %p99 = scmp.eq.s32.totalorder %s14, 1
      %p100 = scmp.ne.s32.totalorder %s95, %s97
      %p101 = scmp.eq.s32.totalorder %s14, 0
      %p102 = por %p100, %p101
      %p103 = scmp.ne.s32.totalorder %s95, %s97
      %p104 = scmp.eq.s32.totalorder %s19, 1
      %p105 = por %p103, %p104
      %p106 = scmp.ne.s32.totalorder %s97, %s98
      %p107 = scmp.eq.s32.totalorder %s19, 0
      %p108 = por %p106, %p107
      %p109 = scmp.ne.s32.totalorder %s97, %s98
      %p110 = scmp.eq.s32.totalorder %s20, 1
      %p111 = por %p109, %p110
      %p113 = scmp.ne.s32.totalorder %s98, %s112
      %p114 = scmp.eq.s32.totalorder %s20, 0
      %p115 = por %p113, %p114
      %s117 = sadd.s32 %s116, 1
      %p120 = scmp.eq.s32.totalorder %s14, 1
      %p121 = scmp.ne.s32.totalorder %s116, %s118
      %p122 = scmp.eq.s32.totalorder %s14, 0
      %p123 = por %p121, %p122
      %p124 = scmp.ne.s32.totalorder %s116, %s118
      %p125 = scmp.eq.s32.totalorder %s19, 1
      %p126 = por %p124, %p125
      %p127 = scmp.ne.s32.totalorder %s118, %s119
      %p128 = scmp.eq.s32.totalorder %s19, 0
      %p129 = por %p127, %p128
      %p130 = scmp.ne.s32.totalorder %s118, %s119
      %p131 = scmp.eq.s32.totalorder %s20, 1
      %p132 = por %p130, %p131
      %p134 = scmp.ne.s32.totalorder %s119, %s133
      %p135 = scmp.eq.s32.totalorder %s20, 0
      %p136 = por %p134, %p135
      %s137 = ssub.s32 %s14, %s21
      %p138 = scmp.eq.s32.totalorder %s137, 0
      %s140 = sadd.s32 %s139, 1
      %s141 = scalar_select %p138, %s139, %s140
      %p144 = pneg %p138
      %p145 = scmp.eq.s32.totalorder %s14, 1
      %p146 = por %p144, %p145
      %p147 = scmp.ne.s32.totalorder %s139, %s142
      %p148 = scmp.eq.s32.totalorder %s14, 0
      %p149 = por %p147, %p148
      %p150 = scmp.ne.s32.totalorder %s139, %s142
      %p151 = scmp.eq.s32.totalorder %s19, 1
      %p152 = por %p150, %p151
      %p153 = scmp.ne.s32.totalorder %s142, %s143
      %p154 = scmp.eq.s32.totalorder %s19, 0
      %p155 = por %p153, %p154
      %p156 = scmp.ne.s32.totalorder %s142, %s143
      %p157 = scmp.eq.s32.totalorder %s20, 1
      %p158 = por %p156, %p157
      %p160 = scmp.ne.s32.totalorder %s143, %s159
      %p161 = scmp.eq.s32.totalorder %s20, 0
      %p162 = por %p160, %p161
      %p163 = scmp.le.s32.totalorder 1, %s14
      %p164 = scmp.lt.s32.totalorder %s14, 3
      %p165 = pnand %p163, %p164
      %p166 = pneg %p165
      // Predicated region
      $region9: #{tpu_custom_call.1} parent=5 // pred_check
        _
      $region10: #{tpu_custom_call.1} parent=5 // pred_check_branch
        %168 = sbr.rel (%p165) target = $region12
      $region11: #{tpu_custom_call.1} parent=5 // pred_region
        %s169 = ssub.s32 %s14, 1
        // Predicated region
        $region13: #{tpu_custom_call.1} parent=11 // pred_check
          %p170 = pneg %p87
        $region14: #{tpu_custom_call.1} parent=11 // pred_check_branch
          %172 = sbr.rel (%p170) target = $region16
        $region15: #{tpu_custom_call.1} parent=11 // pred_region
          _
        $region16: #{tpu_custom_call.1} parent=11 // pred_fallthru
          _
        // Predicated region
        $region17: #{tpu_custom_call.1} parent=11 // pred_check
          %p173 = pneg %p108
        $region18: #{tpu_custom_call.1} parent=11 // pred_check_branch
          %175 = sbr.rel (%p173) target = $region20
        $region19: #{tpu_custom_call.1} parent=11 // pred_region
          _
        $region20: #{tpu_custom_call.1} parent=11 // pred_fallthru
          _
        // Predicated region
        $region21: #{tpu_custom_call.1} parent=11 // pred_check
          %p176 = pneg %p129
        $region22: #{tpu_custom_call.1} parent=11 // pred_check_branch
          %178 = sbr.rel (%p176) target = $region24
        $region23: #{tpu_custom_call.1} parent=11 // pred_region
          _
        $region24: #{tpu_custom_call.1} parent=11 // pred_fallthru
          _
      $region12: #{tpu_custom_call.1} parent=5 // pred_fallthru
        _
      %p179 = scmp.lt.s32.totalorder %s14, 2
      // Predicated region
      $region25: #{tpu_custom_call.1} parent=5 // pred_check
        %p180 = pneg %p179
      $region26: #{tpu_custom_call.1} parent=5 // pred_check_branch
        %182 = sbr.rel (%p180) target = $region28
      $region27: #{tpu_custom_call.1} parent=5 // pred_region
        // Predicated region
        $region29: #{tpu_custom_call.1} parent=27 // pred_check
          %p183 = pneg %p34
        $region30: #{tpu_custom_call.1} parent=27 // pred_check_branch
          %185 = sbr.rel (%p183) target = $region32
        $region31: #{tpu_custom_call.1} parent=27 // pred_region
          %p186 = scmp.lt.s32.totalorder %s14, 1
          %s187 = scalar_select %p186, %s14, 1
          %s188 = smul.addr %s187, 4
          %s189 = smul.addr %s188, 8
          %s190 = scalar_lea.vmem %s0, %s189
        $region32: #{tpu_custom_call.1} parent=27 // pred_fallthru
          _
        // Predicated region
        $region33: #{tpu_custom_call.1} parent=27 // pred_check
          %p191 = pneg %p60
        $region34: #{tpu_custom_call.1} parent=27 // pred_check_branch
          %193 = sbr.rel (%p191) target = $region36
        $region35: #{tpu_custom_call.1} parent=27 // pred_region
          %p194 = scmp.lt.s32.totalorder %s14, 1
          %s195 = scalar_select %p194, %s14, 1
          %s196 = smul.addr %s195, 17
          %s197 = smul.addr %s196, 8
          %s198 = scalar_lea.vmem %s1, %s197
        $region36: #{tpu_custom_call.1} parent=27 // pred_fallthru
          _
      $region28: #{tpu_custom_call.1} parent=5 // pred_fallthru
        _
      %p199 = scmp.le.s32.totalorder 1, %s14
      %p200 = scmp.lt.s32.totalorder %s14, 3
      %p201 = pnand %p199, %p200
      %p202 = pneg %p201
      // Predicated region
      $region37: #{tpu_custom_call.1} parent=5 // pred_check
        _
      $region38: #{tpu_custom_call.1} parent=5 // pred_check_branch
        %204 = sbr.rel (%p201) target = $region40
      $region39: #{tpu_custom_call.1} parent=5 // pred_region
        %s205 = ssub.s32 %s14, 1
        %p206 = scmp.lt.s32.totalorder %s19, 1
        %s207 = scalar_select %p206, %s19, 1
        %s208 = smul.addr %s207, 4
        %s209 = smul.addr %s208, 8
        %s210 = scalar_lea.vmem %s0, %s209
        %p211 = pneg %p40
        %p212 = pneg %p37
        %p213 = scmp.lt.s32.totalorder %s19, 1
        %s214 = scalar_select %p213, %s19, 1
        %s215 = smul.addr %s214, 17
        %s216 = smul.addr %s215, 8
        %s217 = scalar_lea.vmem %s1, %s216
        %p218 = pneg %p66
        %p219 = pneg %p63
        %p220 = pneg %p87
        %p221 = pneg %p84
        %p222 = pneg %p108
        %p223 = pneg %p105
        %p224 = pneg %p129
        %p225 = pneg %p126
        %p226 = pneg %p155
        %p227 = pneg %p152
        %s228 = sand.u32 %s142, 1
        %s229 = scalar_lea.sflag [#allocation3], %s228
        %s230 = sand.u32 %s142, 1
        %s231 = scalar_lea.vmem [#allocation2], %s230
        %p232 = scmp.lt.s32.totalorder %s19, 1
        %s233 = scalar_select %p232, %s19, 1
        %s234 = smul.addr %s233, 4
        %s235 = smul.addr %s234, 8
        %s236 = scalar_lea.vmem %s0, %s235
        %p237 = scmp.lt.s32.totalorder %s19, 1
        %s238 = scalar_select %p237, %s19, 1
        %s239 = smul.addr %s238, 17
        %s240 = smul.addr %s239, 8
        %s241 = scalar_lea.vmem %s1, %s240
        %v242 = vld [vmem:[%s236] sm:$0xff]
        %v243 = vld [vmem:[%s236 + $0x8] sm:$0xff]
        %v244 = vld [vmem:[%s236 + $0x10] sm:$0xff]
        %v245 = vld [vmem:[%s236 + $0x18] sm:$0xff]
        %v246 = vld [vmem:[%s241] sm:$0xff]
        %v247 = vld [vmem:[%s241 + $0x8] sm:$0xff]
        %v248 = vld [vmem:[%s241 + $0x10] sm:$0xff]
        %v249 = vld [vmem:[%s241 + $0x18] sm:$0xff]
        %v250 = vld [vmem:[%s241 + $0x20] sm:$0xff]
        %v251 = vld [vmem:[%s241 + $0x28] sm:$0xff]
        %v252 = vld [vmem:[%s241 + $0x30] sm:$0xff]
        %v253 = vld [vmem:[%s241 + $0x38] sm:$0xff]
        %v254 = vld [vmem:[%s241 + $0x40] sm:$0xff]
        %v255 = vld [vmem:[%s241 + $0x48] sm:$0xff]
        %v256 = vld [vmem:[%s241 + $0x50] sm:$0xff]
        %v257 = vld [vmem:[%s241 + $0x58] sm:$0xff]
        %v258 = vld [vmem:[%s241 + $0x60] sm:$0xff]
        %v259 = vld [vmem:[%s241 + $0x68] sm:$0xff]
        %v260 = vld [vmem:[%s241 + $0x70] sm:$0xff]
        %v261 = vld [vmem:[%s241 + $0x78] sm:$0xff]
        %v262 = vld [vmem:[%s241 + $0x80] sm:$0xff]
        %v263 = vld [vmem:[%s2] sm:$0xff]
        %v264 = vld [vmem:[%s2 + $0x8] sm:$0xff]
        %v265 = vld [vmem:[%s2 + $0x10] sm:$0xff]
        %v266 = vld [vmem:[%s2 + $0x18] sm:$0xff]
        %v267 = vld [vmem:[%s2 + $0x20] sm:$0x3]
        %v268 = vld [vmem:[%s3] sm:$0xff]
        %v269 = vld [vmem:[%s3 + $0x8] sm:$0xff]
        %v270 = vld [vmem:[%s3 + $0x10] sm:$0x3]
        %vm271 = vcmask 146432
        %v273 = vsel %vm271, %v263, 0
        %v276 = vsel %vm271, %v264, 0
        %v279 = vsel %vm271, %v265, 0
        %v282 = vsel %vm271, %v266, 0
        %v285 = vsel %vm271, %v267, 0
        %vm287 = vcmask 1041408
        %v289 = vsel %vm287, %v270, 0
        %291 = vmatprep.subr.mxu0 0.0
        %292 = vmatpush1.msra.mxu0 %v268
        %293 = vmatprep.subr.mxu0 0.0
        %294 = vmatpush1.msra.mxu0 %v269
        %295 = vmatprep.subr.mxu0 0.0
        %296 = vmatpush1.msra.mxu0 %v289
        %297 = vmatprep.subr.mxu0 0.0
        %298 = vmatpush1.msra.mxu0 0.0
        %299 = vmatprep.subr.mxu0 0.0
        %300 = vmatpush1.msra.mxu0 0.0
        %301 = vmatprep.subr.mxu0 0.0
        %302 = vmatpush1.msra.mxu0 0.0
        %303 = vmatprep.subr.mxu0 0.0
        %304 = vmatpush1.msra.mxu0 0.0
        %305 = vmatprep.subr.mxu0 0.0
        %306 = vmatpush1.msra.mxu0 0.0
        %307 = vmatprep.subr.mxu0 0.0
        %308 = vmatpush1.msra.mxu0 0.0
        %309 = vmatprep.subr.mxu0 0.0
        %310 = vmatpush1.msra.mxu0 0.0
        %311 = vmatprep.subr.mxu0 0.0
        %312 = vmatpush1.msra.mxu0 0.0
        %313 = vmatprep.subr.mxu0 0.0
        %314 = vmatpush1.msra.mxu0 0.0
        %315 = vmatprep.subr.mxu0 0.0
        %316 = vmatpush1.msra.mxu0 0.0
        %317 = vmatprep.subr.mxu0 0.0
        %318 = vmatpush1.msra.mxu0 0.0
        %319 = vmatprep.subr.mxu0 0.0
        %320 = vmatpush1.msra.mxu0 0.0
        %321 = vmatprep.subr.mxu0 0.0
        %322 = vmatpush1.msra.mxu0 0.0
        %323 = vmatprep.subr.mxu0 0.0
        %324 = vmatpush1.msra.mxu0 0.0
        %325 = vmatprep.subr.mxu0 0.0
        %326 = vmatpush1.msra.mxu0 0.0
        %327 = vmatprep.subr.mxu0 0.0
        %328 = vmatpush1.msra.mxu0 0.0
        %329 = vmatprep.subr.mxu0 0.0
        %330 = vmatpush1.msra.mxu0 0.0
        %331 = vmatprep.subr.mxu0 0.0
        %332 = vmatpush1.msra.mxu0 0.0
        %333 = vmatprep.subr.mxu0 0.0
        %334 = vmatpush1.msra.mxu0 0.0
        %335 = vmatprep.subr.mxu0 0.0
        %336 = vmatpush1.msra.mxu0 0.0
        %337 = vmatprep.subr.mxu0 0.0
        %338 = vmatpush1.msra.mxu0 0.0
        %339 = vmatprep.subr.mxu0 0.0
        %340 = vmatpush1.msra.mxu0 0.0
        %341 = vmatprep.subr.mxu0 0.0
        %342 = vmatpush1.msra.mxu0 0.0
        %343 = vmatprep.subr.mxu0 0.0
        %344 = vmatpush1.msra.mxu0 0.0
        %345 = vmatprep.subr.mxu0 0.0
        %346 = vmatpush1.msra.mxu0 0.0
        %347 = vmatprep.subr.mxu0 0.0
        %348 = vmatpush1.msra.mxu0 0.0
        %349 = vmatprep.subr.mxu0 0.0
        %350 = vmatpush1.msra.mxu0 0.0
        %351 = vmatprep.subr.mxu0 0.0
        %352 = vmatpush1.msra.mxu0 0.0
        %353 = vmatprep.subr.mxu0 0.0
        %354 = vmatpush1.msra.mxu0 0.0
        %355 = vmatprep.mubr.f32.mxu0 0.0
        %356 = vmatmul.mubr.f32.gmra.mrb[0].mxu0 %v273
        %v357 = vpop.f32.mrb[0].mxu0
        %v358 = vadd.f32 0.0, %v357
        %v359 = vpop.f32.mrb[0].mxu0
        %360 = vmatprep.mubr.f32.mxu0 0.0
        %361 = vmatmul.mubr.f32.gmra.mrb[0].mxu0 %v276
        %v362 = vpop.f32.mrb[0].mxu0
        %v363 = vadd.f32 0.0, %v362
        %v364 = vpop.f32.mrb[0].mxu0
        %365 = vmatprep.mubr.f32.mxu0 0.0
        %366 = vmatmul.mubr.f32.gmra.mrb[0].mxu0 %v279
        %v367 = vpop.f32.mrb[0].mxu0
        %v368 = vadd.f32 0.0, %v367
        %v369 = vpop.f32.mrb[0].mxu0
        %370 = vmatprep.mubr.f32.mxu0 0.0
        %371 = vmatmul.mubr.f32.gmra.mrb[0].mxu0 %v282
        %v372 = vpop.f32.mrb[0].mxu0
        %v373 = vadd.f32 0.0, %v372
        %v374 = vpop.f32.mrb[0].mxu0
        %375 = vmatprep.mubr.f32.mxu0 0.0
        %376 = vmatmul.mubr.f32.gmra.mrb[0].mxu0 %v285
        %v377 = vpop.f32.mrb[0].mxu0
        %v378 = vadd.f32 0.0, %v377
        %v379 = vpop.f32.mrb[0].mxu0
        %380 = vdwg.mxu0
        %vm381 = vcmask 277504
        %v383 = vsel %vm381, %v242, 0
        %v386 = vsel %vm381, %v243, 0
        %v389 = vsel %vm381, %v244, 0
        %v392 = vsel %vm381, %v245, 0
        %v395 = vsel %vm287, %v378, 0
        %397 = vmatprep.subr.mxu0 0.0
        %398 = vmatpush1.msra.mxu0 %v358
        %399 = vmatprep.subr.mxu0 0.0
        %400 = vmatpush1.msra.mxu0 %v363
        %401 = vmatprep.subr.mxu0 0.0
        %402 = vmatpush1.msra.mxu0 %v368
        %403 = vmatprep.subr.mxu0 0.0
        %404 = vmatpush1.msra.mxu0 %v373
        %405 = vmatprep.subr.mxu0 0.0
        %406 = vmatpush1.msra.mxu0 %v395
        %407 = vmatprep.subr.mxu0 0.0
        %408 = vmatpush1.msra.mxu0 0.0
        %409 = vmatprep.subr.mxu0 0.0
        %410 = vmatpush1.msra.mxu0 0.0
        %411 = vmatprep.subr.mxu0 0.0
        %412 = vmatpush1.msra.mxu0 0.0
        %413 = vmatprep.subr.mxu0 0.0
        %414 = vmatpush1.msra.mxu0 0.0
        %415 = vmatprep.subr.mxu0 0.0
        %416 = vmatpush1.msra.mxu0 0.0
        %417 = vmatprep.subr.mxu0 0.0
        %418 = vmatpush1.msra.mxu0 0.0
        %419 = vmatprep.subr.mxu0 0.0
        %420 = vmatpush1.msra.mxu0 0.0
        %421 = vmatprep.subr.mxu0 0.0
        %422 = vmatpush1.msra.mxu0 0.0
        %423 = vmatprep.subr.mxu0 0.0
        %424 = vmatpush1.msra.mxu0 0.0
        %425 = vmatprep.subr.mxu0 0.0
        %426 = vmatpush1.msra.mxu0 0.0
        %427 = vmatprep.subr.mxu0 0.0
        %428 = vmatpush1.msra.mxu0 0.0
        %429 = vmatprep.subr.mxu0 0.0
        %430 = vmatpush1.msra.mxu0 0.0
        %431 = vmatprep.subr.mxu0 0.0
        %432 = vmatpush1.msra.mxu0 0.0
        %433 = vmatprep.subr.mxu0 0.0
        %434 = vmatpush1.msra.mxu0 0.0
        %435 = vmatprep.subr.mxu0 0.0
        %436 = vmatpush1.msra.mxu0 0.0
        %437 = vmatprep.subr.mxu0 0.0
        %438 = vmatpush1.msra.mxu0 0.0
        %439 = vmatprep.subr.mxu0 0.0
        %440 = vmatpush1.msra.mxu0 0.0
        %441 = vmatprep.subr.mxu0 0.0
        %442 = vmatpush1.msra.mxu0 0.0
        %443 = vmatprep.subr.mxu0 0.0
        %444 = vmatpush1.msra.mxu0 0.0
        %445 = vmatprep.subr.mxu0 0.0
        %446 = vmatpush1.msra.mxu0 0.0
        %447 = vmatprep.subr.mxu0 0.0
        %448 = vmatpush1.msra.mxu0 0.0
        %449 = vmatprep.subr.mxu0 0.0
        %450 = vmatpush1.msra.mxu0 0.0
        %451 = vmatprep.subr.mxu0 0.0
        %452 = vmatpush1.msra.mxu0 0.0
        %453 = vmatprep.subr.mxu0 0.0
        %454 = vmatpush1.msra.mxu0 0.0
        %455 = vmatprep.subr.mxu0 0.0
        %456 = vmatpush1.msra.mxu0 0.0
        %457 = vmatprep.subr.mxu0 0.0
        %458 = vmatpush1.msra.mxu0 0.0
        %459 = vmatprep.subr.mxu0 0.0
        %460 = vmatpush1.msra.mxu0 0.0
        %461 = vmatprep.mubr.f32.mxu0 0.0
        %462 = vmatmul.mubr.f32.gmra.mrb[0].mxu0 %v383
        %v463 = vpop.f32.mrb[0].mxu0
        %v464 = vadd.f32 0.0, %v463
        %v465 = vpop.f32.mrb[0].mxu0
        %466 = vmatprep.mubr.f32.mxu0 0.0
        %467 = vmatmul.mubr.f32.gmra.mrb[0].mxu0 %v386
        %v468 = vpop.f32.mrb[0].mxu0
        %v469 = vadd.f32 0.0, %v468
        %v470 = vpop.f32.mrb[0].mxu0
        %471 = vmatprep.mubr.f32.mxu0 0.0
        %472 = vmatmul.mubr.f32.gmra.mrb[0].mxu0 %v389
        %v473 = vpop.f32.mrb[0].mxu0
        %v474 = vadd.f32 0.0, %v473
        %v475 = vpop.f32.mrb[0].mxu0
        %476 = vmatprep.mubr.f32.mxu0 0.0
        %477 = vmatmul.mubr.f32.gmra.mrb[0].mxu0 %v392
        %v478 = vpop.f32.mrb[0].mxu0
        %v479 = vadd.f32 0.0, %v478
        %v480 = vpop.f32.mrb[0].mxu0
        %481 = vdwg.mxu0
        %vm482 = vcmask 261120
        %v484 = vsel %vm482, %v246, 0
        %v487 = vsel %vm482, %v247, 0
        %v490 = vsel %vm482, %v248, 0
        %v493 = vsel %vm482, %v249, 0
        %v496 = vsel %vm482, %v250, 0
        %v499 = vsel %vm482, %v251, 0
        %v502 = vsel %vm482, %v252, 0
        %v505 = vsel %vm482, %v253, 0
        %v508 = vsel %vm482, %v254, 0
        %v511 = vsel %vm482, %v255, 0
        %v514 = vsel %vm482, %v256, 0
        %v517 = vsel %vm482, %v257, 0
        %v520 = vsel %vm482, %v258, 0
        %v523 = vsel %vm482, %v259, 0
        %v526 = vsel %vm482, %v260, 0
        %v529 = vsel %vm482, %v261, 0
        %v532 = vsel %vm482, %v262, 0
        %534 = vmatprep.subr.mxu0 0.0
        %535 = vmatpush1.msra.mxu0 %v464
        %536 = vmatprep.subr.mxu0 0.0
        %537 = vmatpush1.msra.mxu0 %v469
        %538 = vmatprep.subr.mxu0 0.0
        %539 = vmatpush1.msra.mxu0 %v474
        %540 = vmatprep.subr.mxu0 0.0
        %541 = vmatpush1.msra.mxu0 %v479
        %542 = vmatprep.subr.mxu0 0.0
        %543 = vmatpush1.msra.mxu0 0.0
        %544 = vmatprep.subr.mxu0 0.0
        %545 = vmatpush1.msra.mxu0 0.0
        %546 = vmatprep.subr.mxu0 0.0
        %547 = vmatpush1.msra.mxu0 0.0
        %548 = vmatprep.subr.mxu0 0.0
        %549 = vmatpush1.msra.mxu0 0.0
        %550 = vmatprep.subr.mxu0 0.0
        %551 = vmatpush1.msra.mxu0 0.0
        %552 = vmatprep.subr.mxu0 0.0
        %553 = vmatpush1.msra.mxu0 0.0
        %554 = vmatprep.subr.mxu0 0.0
        %555 = vmatpush1.msra.mxu0 0.0
        %556 = vmatprep.subr.mxu0 0.0
        %557 = vmatpush1.msra.mxu0 0.0
        %558 = vmatprep.subr.mxu0 0.0
        %559 = vmatpush1.msra.mxu0 0.0
        %560 = vmatprep.subr.mxu0 0.0
        %561 = vmatpush1.msra.mxu0 0.0
        %562 = vmatprep.subr.mxu0 0.0
        %563 = vmatpush1.msra.mxu0 0.0
        %564 = vmatprep.subr.mxu0 0.0
        %565 = vmatpush1.msra.mxu0 0.0
        %566 = vmatprep.subr.mxu0 0.0
        %567 = vmatpush1.msra.mxu0 0.0
        %568 = vmatprep.subr.mxu0 0.0
        %569 = vmatpush1.msra.mxu0 0.0
        %570 = vmatprep.subr.mxu0 0.0
        %571 = vmatpush1.msra.mxu0 0.0
        %572 = vmatprep.subr.mxu0 0.0
        %573 = vmatpush1.msra.mxu0 0.0
        %574 = vmatprep.subr.mxu0 0.0
        %575 = vmatpush1.msra.mxu0 0.0
        %576 = vmatprep.subr.mxu0 0.0
        %577 = vmatpush1.msra.mxu0 0.0
        %578 = vmatprep.subr.mxu0 0.0
        %579 = vmatpush1.msra.mxu0 0.0
        %580 = vmatprep.subr.mxu0 0.0
        %581 = vmatpush1.msra.mxu0 0.0
        %582 = vmatprep.subr.mxu0 0.0
        %583 = vmatpush1.msra.mxu0 0.0
        %584 = vmatprep.subr.mxu0 0.0
        %585 = vmatpush1.msra.mxu0 0.0
        %586 = vmatprep.subr.mxu0 0.0
        %587 = vmatpush1.msra.mxu0 0.0
        %588 = vmatprep.subr.mxu0 0.0
        %589 = vmatpush1.msra.mxu0 0.0
        %590 = vmatprep.subr.mxu0 0.0
        %591 = vmatpush1.msra.mxu0 0.0
        %592 = vmatprep.subr.mxu0 0.0
        %593 = vmatpush1.msra.mxu0 0.0
        %594 = vmatprep.subr.mxu0 0.0
        %595 = vmatpush1.msra.mxu0 0.0
        %596 = vmatprep.subr.mxu0 0.0
        %597 = vmatpush1.msra.mxu0 0.0
        %598 = vmatprep.mubr.f32.mxu0 0.0
        %599 = vmatmul.mubr.f32.gmra.mrb[0].mxu0 %v484
        %v600 = vpop.f32.mrb[0].mxu0
        %v601 = vadd.f32 0.0, %v600
        %v602 = vpop.f32.mrb[0].mxu0
        %603 = vmatprep.mubr.f32.mxu0 0.0
        %604 = vmatmul.mubr.f32.gmra.mrb[0].mxu0 %v487
        %v605 = vpop.f32.mrb[0].mxu0
        %v606 = vadd.f32 0.0, %v605
        %v607 = vpop.f32.mrb[0].mxu0
        %608 = vmatprep.mubr.f32.mxu0 0.0
        %609 = vmatmul.mubr.f32.gmra.mrb[0].mxu0 %v490
        %v610 = vpop.f32.mrb[0].mxu0
        %v611 = vadd.f32 0.0, %v610
        %v612 = vpop.f32.mrb[0].mxu0
        %613 = vmatprep.mubr.f32.mxu0 0.0
        %614 = vmatmul.mubr.f32.gmra.mrb[0].mxu0 %v493
        %v615 = vpop.f32.mrb[0].mxu0
        %v616 = vadd.f32 0.0, %v615
        %v617 = vpop.f32.mrb[0].mxu0
        %618 = vmatprep.mubr.f32.mxu0 0.0
        %619 = vmatmul.mubr.f32.gmra.mrb[0].mxu0 %v496
        %v620 = vpop.f32.mrb[0].mxu0
        %v621 = vadd.f32 0.0, %v620
        %v622 = vpop.f32.mrb[0].mxu0
        %623 = vmatprep.mubr.f32.mxu0 0.0
        %624 = vmatmul.mubr.f32.gmra.mrb[0].mxu0 %v499
        %v625 = vpop.f32.mrb[0].mxu0
        %v626 = vadd.f32 0.0, %v625
        %v627 = vpop.f32.mrb[0].mxu0
        %628 = vmatprep.mubr.f32.mxu0 0.0
        %629 = vmatmul.mubr.f32.gmra.mrb[0].mxu0 %v502
        %v630 = vpop.f32.mrb[0].mxu0
        %v631 = vadd.f32 0.0, %v630
        %v632 = vpop.f32.mrb[0].mxu0
        %633 = vmatprep.mubr.f32.mxu0 0.0
        %634 = vmatmul.mubr.f32.gmra.mrb[0].mxu0 %v505
        %v635 = vpop.f32.mrb[0].mxu0
        %v636 = vadd.f32 0.0, %v635
        %v637 = vpop.f32.mrb[0].mxu0
        %638 = vmatprep.mubr.f32.mxu0 0.0
        %639 = vmatmul.mubr.f32.gmra.mrb[0].mxu0 %v508
        %v640 = vpop.f32.mrb[0].mxu0
        %v641 = vadd.f32 0.0, %v640
        %v642 = vpop.f32.mrb[0].mxu0
        %643 = vmatprep.mubr.f32.mxu0 0.0
        %644 = vmatmul.mubr.f32.gmra.mrb[0].mxu0 %v511
        %v645 = vpop.f32.mrb[0].mxu0
        %v646 = vadd.f32 0.0, %v645
        %v647 = vpop.f32.mrb[0].mxu0
        %648 = vmatprep.mubr.f32.mxu0 0.0
        %649 = vmatmul.mubr.f32.gmra.mrb[0].mxu0 %v514
        %v650 = vpop.f32.mrb[0].mxu0
        %v651 = vadd.f32 0.0, %v650
        %v652 = vpop.f32.mrb[0].mxu0
        %653 = vmatprep.mubr.f32.mxu0 0.0
        %654 = vmatmul.mubr.f32.gmra.mrb[0].mxu0 %v517
        %v655 = vpop.f32.mrb[0].mxu0
        %v656 = vadd.f32 0.0, %v655
        %v657 = vpop.f32.mrb[0].mxu0
        %658 = vmatprep.mubr.f32.mxu0 0.0
        %659 = vmatmul.mubr.f32.gmra.mrb[0].mxu0 %v520
        %v660 = vpop.f32.mrb[0].mxu0
        %v661 = vadd.f32 0.0, %v660
        %v662 = vpop.f32.mrb[0].mxu0
        %663 = vmatprep.mubr.f32.mxu0 0.0
        %664 = vmatmul.mubr.f32.gmra.mrb[0].mxu0 %v523
        %v665 = vpop.f32.mrb[0].mxu0
        %v666 = vadd.f32 0.0, %v665
        %v667 = vpop.f32.mrb[0].mxu0
        %668 = vmatprep.mubr.f32.mxu0 0.0
        %669 = vmatmul.mubr.f32.gmra.mrb[0].mxu0 %v526
        %v670 = vpop.f32.mrb[0].mxu0
        %v671 = vadd.f32 0.0, %v670
        %v672 = vpop.f32.mrb[0].mxu0
        %673 = vmatprep.mubr.f32.mxu0 0.0
        %674 = vmatmul.mubr.f32.gmra.mrb[0].mxu0 %v529
        %v675 = vpop.f32.mrb[0].mxu0
        %v676 = vadd.f32 0.0, %v675
        %v677 = vpop.f32.mrb[0].mxu0
        %678 = vmatprep.mubr.f32.mxu0 0.0
        %679 = vmatmul.mubr.f32.gmra.mrb[0].mxu0 %v532
        %v680 = vpop.f32.mrb[0].mxu0
        %v681 = vadd.f32 0.0, %v680
        %v682 = vpop.f32.mrb[0].mxu0
        %683 = vdwg.mxu0
        %v684 = vld [vmem:[%s4] sm:$0xff]
        %v685 = vld [vmem:[%s4 + $0x8] sm:$0xff]
        %v686 = vld [vmem:[%s4 + $0x10] sm:$0xff]
        %v687 = vld [vmem:[%s4 + $0x18] sm:$0xff]
        %v688 = vld [vmem:[%s4 + $0x20] sm:$0xff]
        %v689 = vld [vmem:[%s4 + $0x28] sm:$0xff]
        %v690 = vld [vmem:[%s4 + $0x30] sm:$0x7]
        %v692 = vrot.slane %v681, 1
        %vm693 = vcmask 130048
        %v694 = vsel %vm693, %v692, 0
        %696 = vmatprep.subr.mxu0 0.0
        %697 = vmatpush1.msra.mxu0 %v686
        %698 = vmatprep.subr.mxu0 0.0
        %699 = vmatpush1.msra.mxu0 %v687
        %700 = vmatprep.subr.mxu0 0.0
        %701 = vmatpush1.msra.mxu0 0.0
        %702 = vmatprep.subr.mxu0 0.0
        %703 = vmatpush1.msra.mxu0 0.0
        %704 = vmatprep.subr.mxu0 0.0
        %705 = vmatpush1.msra.mxu0 0.0
        %706 = vmatprep.subr.mxu0 0.0
        %707 = vmatpush1.msra.mxu0 0.0
        %708 = vmatprep.subr.mxu0 0.0
        %709 = vmatpush1.msra.mxu0 0.0
        %710 = vmatprep.subr.mxu0 0.0
        %711 = vmatpush1.msra.mxu0 0.0
        %712 = vmatprep.subr.mxu0 0.0
        %713 = vmatpush1.msra.mxu0 0.0
        %714 = vmatprep.subr.mxu0 0.0
        %715 = vmatpush1.msra.mxu0 0.0
        %716 = vmatprep.subr.mxu0 0.0
        %717 = vmatpush1.msra.mxu0 0.0
        %718 = vmatprep.subr.mxu0 0.0
        %719 = vmatpush1.msra.mxu0 0.0
        %720 = vmatprep.subr.mxu0 0.0
        %721 = vmatpush1.msra.mxu0 0.0
        %722 = vmatprep.subr.mxu0 0.0
        %723 = vmatpush1.msra.mxu0 0.0
        %724 = vmatprep.subr.mxu0 0.0
        %725 = vmatpush1.msra.mxu0 0.0
        %726 = vmatprep.subr.mxu0 0.0
        %727 = vmatpush1.msra.mxu0 0.0
        %728 = vmatprep.subr.mxu0 0.0
        %729 = vmatpush1.msra.mxu0 0.0
        %730 = vmatprep.subr.mxu0 0.0
        %731 = vmatpush1.msra.mxu0 0.0
        %732 = vmatprep.subr.mxu0 0.0
        %733 = vmatpush1.msra.mxu0 0.0
        %734 = vmatprep.subr.mxu0 0.0
        %735 = vmatpush1.msra.mxu0 0.0
        %736 = vmatprep.subr.mxu0 0.0
        %737 = vmatpush1.msra.mxu0 0.0
        %738 = vmatprep.subr.mxu0 0.0
        %739 = vmatpush1.msra.mxu0 0.0
        %740 = vmatprep.subr.mxu0 0.0
        %741 = vmatpush1.msra.mxu0 0.0
        %742 = vmatprep.subr.mxu0 0.0
        %743 = vmatpush1.msra.mxu0 0.0
        %744 = vmatprep.subr.mxu0 0.0
        %745 = vmatpush1.msra.mxu0 0.0
        %746 = vmatprep.subr.mxu0 0.0
        %747 = vmatpush1.msra.mxu0 0.0
        %748 = vmatprep.subr.mxu0 0.0
        %749 = vmatpush1.msra.mxu0 0.0
        %750 = vmatprep.subr.mxu0 0.0
        %751 = vmatpush1.msra.mxu0 0.0
        %752 = vmatprep.subr.mxu0 0.0
        %753 = vmatpush1.msra.mxu0 0.0
        %754 = vmatprep.subr.mxu0 0.0
        %755 = vmatpush1.msra.mxu0 0.0
        %756 = vmatprep.subr.mxu0 0.0
        %757 = vmatpush1.msra.mxu0 0.0
        %758 = vmatprep.subr.mxu0 0.0
        %759 = vmatpush1.msra.mxu0 0.0
        %760 = vmatprep.mubr.f32.mxu0 0.0
        %761 = vmatmul.mubr.f32.gmra.mrb[0].mxu0 %v694
        %v762 = vpop.f32.mrb[0].mxu0
        %v763 = vadd.f32 0.0, %v762
        %v764 = vpop.f32.mrb[0].mxu0
        %765 = vdwg.mxu0
        %v766 = vsel %vm693, %v681, 0
        %768 = vmatprep.subr.mxu0 0.0
        %769 = vmatpush1.msra.mxu0 %v684
        %770 = vmatprep.subr.mxu0 0.0
        %771 = vmatpush1.msra.mxu0 %v685
        %772 = vmatprep.subr.mxu0 0.0
        %773 = vmatpush1.msra.mxu0 0.0
        %774 = vmatprep.subr.mxu0 0.0
        %775 = vmatpush1.msra.mxu0 0.0
        %776 = vmatprep.subr.mxu0 0.0
        %777 = vmatpush1.msra.mxu0 0.0
        %778 = vmatprep.subr.mxu0 0.0
        %779 = vmatpush1.msra.mxu0 0.0
        %780 = vmatprep.subr.mxu0 0.0
        %781 = vmatpush1.msra.mxu0 0.0
        %782 = vmatprep.subr.mxu0 0.0
        %783 = vmatpush1.msra.mxu0 0.0
        %784 = vmatprep.subr.mxu0 0.0
        %785 = vmatpush1.msra.mxu0 0.0
        %786 = vmatprep.subr.mxu0 0.0
        %787 = vmatpush1.msra.mxu0 0.0
        %788 = vmatprep.subr.mxu0 0.0
        %789 = vmatpush1.msra.mxu0 0.0
        %790 = vmatprep.subr.mxu0 0.0
        %791 = vmatpush1.msra.mxu0 0.0
        %792 = vmatprep.subr.mxu0 0.0
        %793 = vmatpush1.msra.mxu0 0.0
        %794 = vmatprep.subr.mxu0 0.0
        %795 = vmatpush1.msra.mxu0 0.0
        %796 = vmatprep.subr.mxu0 0.0
        %797 = vmatpush1.msra.mxu0 0.0
        %798 = vmatprep.subr.mxu0 0.0
        %799 = vmatpush1.msra.mxu0 0.0
        %800 = vmatprep.subr.mxu0 0.0
        %801 = vmatpush1.msra.mxu0 0.0
        %802 = vmatprep.subr.mxu0 0.0
        %803 = vmatpush1.msra.mxu0 0.0
        %804 = vmatprep.subr.mxu0 0.0
        %805 = vmatpush1.msra.mxu0 0.0
        %806 = vmatprep.subr.mxu0 0.0
        %807 = vmatpush1.msra.mxu0 0.0
        %808 = vmatprep.subr.mxu0 0.0
        %809 = vmatpush1.msra.mxu0 0.0
        %810 = vmatprep.subr.mxu0 0.0
        %811 = vmatpush1.msra.mxu0 0.0
        %812 = vmatprep.subr.mxu0 0.0
        %813 = vmatpush1.msra.mxu0 0.0
        %814 = vmatprep.subr.mxu0 0.0
        %815 = vmatpush1.msra.mxu0 0.0
        %816 = vmatprep.subr.mxu0 0.0
        %817 = vmatpush1.msra.mxu0 0.0
        %818 = vmatprep.subr.mxu0 0.0
        %819 = vmatpush1.msra.mxu0 0.0
        %820 = vmatprep.subr.mxu0 0.0
        %821 = vmatpush1.msra.mxu0 0.0
        %822 = vmatprep.subr.mxu0 0.0
        %823 = vmatpush1.msra.mxu0 0.0
        %824 = vmatprep.subr.mxu0 0.0
        %825 = vmatpush1.msra.mxu0 0.0
        %826 = vmatprep.subr.mxu0 0.0
        %827 = vmatpush1.msra.mxu0 0.0
        %828 = vmatprep.subr.mxu0 0.0
        %829 = vmatpush1.msra.mxu0 0.0
        %830 = vmatprep.subr.mxu0 0.0
        %831 = vmatpush1.msra.mxu0 0.0
        %832 = vmatprep.mubr.f32.mxu0 0.0
        %833 = vmatmul.mubr.f32.gmra.mrb[0].mxu0 %v766
        %v834 = vpop.f32.mrb[0].mxu0
        %v835 = vadd.f32 %v763, %v834
        %v836 = vpop.f32.mrb[0].mxu0
        %837 = vdwg.mxu0
        %v838 = vadd.f32 %v835, %v690
        %v839 = vlaneseq
        %v840 = vshrl.u32 %v839, 7
        %v841 = vsub.s32 0, %v840
        %v842 = vrot.slane %v838, %v841
        %v844 = vsel %vm693, %v601, 0
        %v847 = vsel %vm693, %v606, 0
        %v850 = vsel %vm693, %v611, 0
        %v853 = vsel %vm693, %v616, 0
        %v856 = vsel %vm693, %v621, 0
        %v859 = vsel %vm693, %v626, 0
        %v862 = vsel %vm693, %v631, 0
        %v865 = vsel %vm693, %v636, 0
        %v868 = vsel %vm693, %v641, 0
        %v871 = vsel %vm693, %v646, 0
        %v874 = vsel %vm693, %v651, 0
        %v877 = vsel %vm693, %v656, 0
        %v880 = vsel %vm693, %v661, 0
        %v883 = vsel %vm693, %v666, 0
        %v886 = vsel %vm693, %v671, 0
        %v889 = vsel %vm693, %v676, 0
        %891 = vmatprep.subr.mxu0 0.0
        %892 = vmatpush1.msra.mxu0 %v688
        %893 = vmatprep.subr.mxu0 0.0
        %894 = vmatpush1.msra.mxu0 %v689
        %895 = vmatprep.subr.mxu0 0.0
        %896 = vmatpush1.msra.mxu0 0.0
        %897 = vmatprep.subr.mxu0 0.0
        %898 = vmatpush1.msra.mxu0 0.0
        %899 = vmatprep.subr.mxu0 0.0
        %900 = vmatpush1.msra.mxu0 0.0
        %901 = vmatprep.subr.mxu0 0.0
        %902 = vmatpush1.msra.mxu0 0.0
        %903 = vmatprep.subr.mxu0 0.0
        %904 = vmatpush1.msra.mxu0 0.0
        %905 = vmatprep.subr.mxu0 0.0
        %906 = vmatpush1.msra.mxu0 0.0
        %907 = vmatprep.subr.mxu0 0.0
        %908 = vmatpush1.msra.mxu0 0.0
        %909 = vmatprep.subr.mxu0 0.0
        %910 = vmatpush1.msra.mxu0 0.0
        %911 = vmatprep.subr.mxu0 0.0
        %912 = vmatpush1.msra.mxu0 0.0
        %913 = vmatprep.subr.mxu0 0.0
        %914 = vmatpush1.msra.mxu0 0.0
        %915 = vmatprep.subr.mxu0 0.0
        %916 = vmatpush1.msra.mxu0 0.0
        %917 = vmatprep.subr.mxu0 0.0
        %918 = vmatpush1.msra.mxu0 0.0
        %919 = vmatprep.subr.mxu0 0.0
        %920 = vmatpush1.msra.mxu0 0.0
        %921 = vmatprep.subr.mxu0 0.0
        %922 = vmatpush1.msra.mxu0 0.0
        %923 = vmatprep.subr.mxu0 0.0
        %924 = vmatpush1.msra.mxu0 0.0
        %925 = vmatprep.subr.mxu0 0.0
        %926 = vmatpush1.msra.mxu0 0.0
        %927 = vmatprep.subr.mxu0 0.0
        %928 = vmatpush1.msra.mxu0 0.0
        %929 = vmatprep.subr.mxu0 0.0
        %930 = vmatpush1.msra.mxu0 0.0
        %931 = vmatprep.subr.mxu0 0.0
        %932 = vmatpush1.msra.mxu0 0.0
        %933 = vmatprep.subr.mxu0 0.0
        %934 = vmatpush1.msra.mxu0 0.0
        %935 = vmatprep.subr.mxu0 0.0
        %936 = vmatpush1.msra.mxu0 0.0
        %937 = vmatprep.subr.mxu0 0.0
        %938 = vmatpush1.msra.mxu0 0.0
        %939 = vmatprep.subr.mxu0 0.0
        %940 = vmatpush1.msra.mxu0 0.0
        %941 = vmatprep.subr.mxu0 0.0
        %942 = vmatpush1.msra.mxu0 0.0
        %943 = vmatprep.subr.mxu0 0.0
        %944 = vmatpush1.msra.mxu0 0.0
        %945 = vmatprep.subr.mxu0 0.0
        %946 = vmatpush1.msra.mxu0 0.0
        %947 = vmatprep.subr.mxu0 0.0
        %948 = vmatpush1.msra.mxu0 0.0
        %949 = vmatprep.subr.mxu0 0.0
        %950 = vmatpush1.msra.mxu0 0.0
        %951 = vmatprep.subr.mxu0 0.0
        %952 = vmatpush1.msra.mxu0 0.0
        %953 = vmatprep.subr.mxu0 0.0
        %954 = vmatpush1.msra.mxu0 0.0
        %955 = vmatprep.mubr.f32.mxu0 0.0
        %956 = vmatmul.mubr.f32.gmra.mrb[0].mxu0 %v844
        %v957 = vpop.f32.mrb[0].mxu0
        %v958 = vadd.f32 %v842, %v957
        %v959 = vpop.f32.mrb[0].mxu0
        %960 = vmatprep.mubr.f32.mxu0 0.0
        %961 = vmatmul.mubr.f32.gmra.mrb[0].mxu0 %v847
        %v962 = vpop.f32.mrb[0].mxu0
        %v963 = vadd.f32 %v842, %v962
        %v964 = vpop.f32.mrb[0].mxu0
        %965 = vmatprep.mubr.f32.mxu0 0.0
        %966 = vmatmul.mubr.f32.gmra.mrb[0].mxu0 %v850
        %v967 = vpop.f32.mrb[0].mxu0
        %v968 = vadd.f32 %v842, %v967
        %v969 = vpop.f32.mrb[0].mxu0
        %970 = vmatprep.mubr.f32.mxu0 0.0
        %971 = vmatmul.mubr.f32.gmra.mrb[0].mxu0 %v853
        %v972 = vpop.f32.mrb[0].mxu0
        %v973 = vadd.f32 %v842, %v972
        %v974 = vpop.f32.mrb[0].mxu0
        %975 = vmatprep.mubr.f32.mxu0 0.0
        %976 = vmatmul.mubr.f32.gmra.mrb[0].mxu0 %v856
        %v977 = vpop.f32.mrb[0].mxu0
        %v978 = vadd.f32 %v842, %v977
        %v979 = vpop.f32.mrb[0].mxu0
        %980 = vmatprep.mubr.f32.mxu0 0.0
        %981 = vmatmul.mubr.f32.gmra.mrb[0].mxu0 %v859
        %v982 = vpop.f32.mrb[0].mxu0
        %v983 = vadd.f32 %v842, %v982
        %v984 = vpop.f32.mrb[0].mxu0
        %985 = vmatprep.mubr.f32.mxu0 0.0
        %986 = vmatmul.mubr.f32.gmra.mrb[0].mxu0 %v862
        %v987 = vpop.f32.mrb[0].mxu0
        %v988 = vadd.f32 %v842, %v987
        %v989 = vpop.f32.mrb[0].mxu0
        %990 = vmatprep.mubr.f32.mxu0 0.0
        %991 = vmatmul.mubr.f32.gmra.mrb[0].mxu0 %v865
        %v992 = vpop.f32.mrb[0].mxu0
        %v993 = vadd.f32 %v842, %v992
        %v994 = vpop.f32.mrb[0].mxu0
        %995 = vmatprep.mubr.f32.mxu0 0.0
        %996 = vmatmul.mubr.f32.gmra.mrb[0].mxu0 %v868
        %v997 = vpop.f32.mrb[0].mxu0
        %v998 = vadd.f32 %v842, %v997
        %v999 = vpop.f32.mrb[0].mxu0
        %1000 = vmatprep.mubr.f32.mxu0 0.0
        %1001 = vmatmul.mubr.f32.gmra.mrb[0].mxu0 %v871
        %v1002 = vpop.f32.mrb[0].mxu0
        %v1003 = vadd.f32 %v842, %v1002
        %v1004 = vpop.f32.mrb[0].mxu0
        %1005 = vmatprep.mubr.f32.mxu0 0.0
        %1006 = vmatmul.mubr.f32.gmra.mrb[0].mxu0 %v874
        %v1007 = vpop.f32.mrb[0].mxu0
        %v1008 = vadd.f32 %v842, %v1007
        %v1009 = vpop.f32.mrb[0].mxu0
        %1010 = vmatprep.mubr.f32.mxu0 0.0
        %1011 = vmatmul.mubr.f32.gmra.mrb[0].mxu0 %v877
        %v1012 = vpop.f32.mrb[0].mxu0
        %v1013 = vadd.f32 %v842, %v1012
        %v1014 = vpop.f32.mrb[0].mxu0
        %1015 = vmatprep.mubr.f32.mxu0 0.0
        %1016 = vmatmul.mubr.f32.gmra.mrb[0].mxu0 %v880
        %v1017 = vpop.f32.mrb[0].mxu0
        %v1018 = vadd.f32 %v842, %v1017
        %v1019 = vpop.f32.mrb[0].mxu0
        %1020 = vmatprep.mubr.f32.mxu0 0.0
        %1021 = vmatmul.mubr.f32.gmra.mrb[0].mxu0 %v883
        %v1022 = vpop.f32.mrb[0].mxu0
        %v1023 = vadd.f32 %v842, %v1022
        %v1024 = vpop.f32.mrb[0].mxu0
        %1025 = vmatprep.mubr.f32.mxu0 0.0
        %1026 = vmatmul.mubr.f32.gmra.mrb[0].mxu0 %v886
        %v1027 = vpop.f32.mrb[0].mxu0
        %v1028 = vadd.f32 %v842, %v1027
        %v1029 = vpop.f32.mrb[0].mxu0
        %1030 = vmatprep.mubr.f32.mxu0 0.0
        %1031 = vmatmul.mubr.f32.gmra.mrb[0].mxu0 %v889
        %v1032 = vpop.f32.mrb[0].mxu0
        %v1033 = vadd.f32 %v842, %v1032
        %v1034 = vpop.f32.mrb[0].mxu0
        %1035 = vdwg.mxu0
        %v1036 = vmax.f32 %v958, 0.0
        %v1037 = vmax.f32 %v963, 0.0
        %v1038 = vmax.f32 %v968, 0.0
        %v1039 = vmax.f32 %v973, 0.0
        %v1040 = vmax.f32 %v978, 0.0
        %v1041 = vmax.f32 %v983, 0.0
        %v1042 = vmax.f32 %v988, 0.0
        %v1043 = vmax.f32 %v993, 0.0
        %v1044 = vmax.f32 %v998, 0.0
        %v1045 = vmax.f32 %v1003, 0.0
        %v1046 = vmax.f32 %v1008, 0.0
        %v1047 = vmax.f32 %v1013, 0.0
        %v1048 = vmax.f32 %v1018, 0.0
        %v1049 = vmax.f32 %v1023, 0.0
        %v1050 = vmax.f32 %v1028, 0.0
        %v1051 = vmax.f32 %v1033, 0.0
        %1053 = vset.pattern.permute.xlu0 0
        %1054 = vperm.xlu0 %1053, %v690
        %v1055 = vpop.permute.xlu0 %1054
        %v1056 = vrot.slane %v690, 1
        %v1057 = vrot.slane %v1055, 2
        %v1059 = vsel %vm482, %v1056, 0
        %v1062 = vsel %vm482, %v1036, 0
        %v1065 = vsel %vm482, %v1037, 0
        %v1068 = vsel %vm482, %v1038, 0
        %v1071 = vsel %vm482, %v1039, 0
        %v1074 = vsel %vm482, %v1040, 0
        %v1077 = vsel %vm482, %v1041, 0
        %v1080 = vsel %vm482, %v1042, 0
        %v1083 = vsel %vm482, %v1043, 0
        %v1086 = vsel %vm482, %v1044, 0
        %v1089 = vsel %vm482, %v1045, 0
        %v1092 = vsel %vm482, %v1046, 0
        %v1095 = vsel %vm482, %v1047, 0
        %v1098 = vsel %vm482, %v1048, 0
        %v1101 = vsel %vm482, %v1049, 0
        %v1104 = vsel %vm482, %v1050, 0
        %v1107 = vsel %vm482, %v1051, 0
        %1109 = vmatprep.subr.mxu0 0.0
        %1110 = vmatpush1.xpose.msra.mxu0 %v1062
        %1111 = vmatprep.subr.mxu0 0.0
        %1112 = vmatpush1.xpose.msra.mxu0 %v1065
        %1113 = vmatprep.subr.mxu0 0.0
        %1114 = vmatpush1.xpose.msra.mxu0 %v1068
        %1115 = vmatprep.subr.mxu0 0.0
        %1116 = vmatpush1.xpose.msra.mxu0 %v1071
        %1117 = vmatprep.subr.mxu0 0.0
        %1118 = vmatpush1.xpose.msra.mxu0 %v1074
        %1119 = vmatprep.subr.mxu0 0.0
        %1120 = vmatpush1.xpose.msra.mxu0 %v1077
        %1121 = vmatprep.subr.mxu0 0.0
        %1122 = vmatpush1.xpose.msra.mxu0 %v1080
        %1123 = vmatprep.subr.mxu0 0.0
        %1124 = vmatpush1.xpose.msra.mxu0 %v1083
        %1125 = vmatprep.subr.mxu0 0.0
        %1126 = vmatpush1.xpose.msra.mxu0 %v1086
        %1127 = vmatprep.subr.mxu0 0.0
        %1128 = vmatpush1.xpose.msra.mxu0 %v1089
        %1129 = vmatprep.subr.mxu0 0.0
        %1130 = vmatpush1.xpose.msra.mxu0 %v1092
        %1131 = vmatprep.subr.mxu0 0.0
        %1132 = vmatpush1.xpose.msra.mxu0 %v1095
        %1133 = vmatprep.subr.mxu0 0.0
        %1134 = vmatpush1.xpose.msra.mxu0 %v1098
        %1135 = vmatprep.subr.mxu0 0.0
        %1136 = vmatpush1.xpose.msra.mxu0 %v1101
        %1137 = vmatprep.subr.mxu0 0.0
        %1138 = vmatpush1.xpose.msra.mxu0 %v1104
        %1139 = vmatprep.subr.mxu0 0.0
        %1140 = vmatpush1.xpose.msra.mxu0 %v1107
        %1141 = vmatprep.subr.mxu0 0.0
        %1142 = vmatpush1.xpose.msra.mxu0 0.0
        %1143 = vmatprep.subr.mxu0 0.0
        %1144 = vmatpush1.xpose.msra.mxu0 0.0
        %1145 = vmatprep.subr.mxu0 0.0
        %1146 = vmatpush1.xpose.msra.mxu0 0.0
        %1147 = vmatprep.subr.mxu0 0.0
        %1148 = vmatpush1.xpose.msra.mxu0 0.0
        %1149 = vmatprep.subr.mxu0 0.0
        %1150 = vmatpush1.xpose.msra.mxu0 0.0
        %1151 = vmatprep.subr.mxu0 0.0
        %1152 = vmatpush1.xpose.msra.mxu0 0.0
        %1153 = vmatprep.subr.mxu0 0.0
        %1154 = vmatpush1.xpose.msra.mxu0 0.0
        %1155 = vmatprep.subr.mxu0 0.0
        %1156 = vmatpush1.xpose.msra.mxu0 0.0
        %1157 = vmatprep.subr.mxu0 0.0
        %1158 = vmatpush1.xpose.msra.mxu0 0.0
        %1159 = vmatprep.subr.mxu0 0.0
        %1160 = vmatpush1.xpose.msra.mxu0 0.0
        %1161 = vmatprep.subr.mxu0 0.0
        %1162 = vmatpush1.xpose.msra.mxu0 0.0
        %1163 = vmatprep.subr.mxu0 0.0
        %1164 = vmatpush1.xpose.msra.mxu0 0.0
        %1165 = vmatprep.subr.mxu0 0.0
        %1166 = vmatpush1.xpose.msra.mxu0 0.0
        %1167 = vmatprep.subr.mxu0 0.0
        %1168 = vmatpush1.xpose.msra.mxu0 0.0
        %1169 = vmatprep.subr.mxu0 0.0
        %1170 = vmatpush1.xpose.msra.mxu0 0.0
        %1171 = vmatprep.subr.mxu0 0.0
        %1172 = vmatpush1.xpose.msra.mxu0 0.0
        %1173 = vmatprep.mubr.f32.mxu0 0.0
        %1174 = vmatmul.mubr.f32.gmra.mrb[0].mxu0 %v1059
        %v1175 = vpop.f32.mrb[0].mxu0
        %v1176 = vadd.f32 %v1057, %v1175
        %v1177 = vpop.f32.mrb[0].mxu0
        %1178 = vdwg.mxu0
        %1179 = vst [vmem:[%s231] sm:$0x1] %v1176
        %s1180 = sand.u32 %s142, 1
        %s1181 = scalar_lea.sflag [#allocation3], %s1180
        %s1182 = sand.u32 %s142, 1
        %s1183 = scalar_lea.vmem [#allocation2], %s1182
        // Predicated region
        $region41: #{tpu_custom_call.1} parent=39 // pred_check
          %p1184 = pneg %p152
        $region42: #{tpu_custom_call.1} parent=39 // pred_check_branch
          %1186 = sbr.rel (%p1184) target = $region44
        $region43: #{tpu_custom_call.1} parent=39 // pred_region
          %s1188 = ssub.s32 16, 16
          %1189 = vsyncadd %s1181, %s1188
          %s1190 = smul.addr %s19, 16
          %s1191 = scalar_lea.hbm %s5, %s1190
          %s1193 = sshll.u32 %s1183, 4
          %s1194 = int_to_ptr.vmem [resolvable:$true] %s1193
          %1196 = dma.vmem_to_hbm [thread:$0]  %s1194, 16, %s1191, %s1181
        $region44: #{tpu_custom_call.1} parent=39 // pred_fallthru
          _
      $region40: #{tpu_custom_call.1} parent=5 // pred_fallthru
        _
      %p1197 = scmp.le.s32.totalorder 2, %s14
      // Predicated region
      $region45: #{tpu_custom_call.1} parent=5 // pred_check
        %p1198 = pneg %p1197
      $region46: #{tpu_custom_call.1} parent=5 // pred_check_branch
        %1200 = sbr.rel (%p1198) target = $region48
      $region47: #{tpu_custom_call.1} parent=5 // pred_region
        %s1201 = ssub.s32 %s14, 2
        // Predicated region
        $region49: #{tpu_custom_call.1} parent=47 // pred_check
          %p1202 = pneg %p158
        $region50: #{tpu_custom_call.1} parent=47 // pred_check_branch
          %1204 = sbr.rel (%p1202) target = $region52
        $region51: #{tpu_custom_call.1} parent=47 // pred_region
          %s1205 = sand.u32 %s143, 1
          %s1206 = scalar_lea.sflag [#allocation3], %s1205
          %s1207 = sand.u32 %s143, 1
          %s1208 = scalar_lea.vmem [#allocation2], %s1207
          %1209 = dma.done %s1206, 16
        $region52: #{tpu_custom_call.1} parent=47 // pred_fallthru
          _
      $region48: #{tpu_custom_call.1} parent=5 // pred_fallthru
        _
    $region6: #{tpu_custom_call.1} parent=1 // loop_footer
      %s18 = sadd.s32 1, %s14
    $region7: #{tpu_custom_call.1} parent=1 // loop_footer_branch
      %13 = sbr.rel target = $region3
    $region8: #{tpu_custom_call.1} parent=1 // loop_exit
      _
    %1210 = vsyncpa [#allocation3], 1
    %s1211 = scalar_lea.sflag [#allocation3], 1
    %1212 = vsyncpa %s1211, 1

</llo_original>
